<compile_context>
chip_gen: v5e
topology: v5e:2x2
jax: 0.10.0
libtpu: 0.0.40
codegen_flags: <defaults>
</compile_context>

<pallas_src>
import functools

import jax
import jax.numpy as jnp
import numpy as np
from jax import lax
from jax.experimental import pallas as pl
from jax.experimental.pallas import tpu as pltpu


# ---------------------------------------------------------------------------
# Small helpers
# ---------------------------------------------------------------------------
def _mm_nt(a, b):
    """a @ b.T on the MXU (contraction over the shared last dim), f32 accum."""
    return lax.dot_general(
        a, b,
        dimension_numbers=(((1,), (1,)), ((), ())),
        preferred_element_type=jnp.float32,
    )


def _row_layout_rowsum(u):
    """(B, D) f32 -> (1, B) of per-row sums, laid out along lanes.

    A ones-vector matvec on the MXU produces the lane-major (1, B) layout
    directly, so no (B,1)->(1,B) relayout/transpose and no (B,B) temporary is
    needed.  The operand is split into a bf16-exact high part plus residual so
    the result keeps ~f32 accuracy regardless of how the MXU decomposes f32
    operands into bf16 passes (these sums feed threshold decisions and the
    very sharp exp(w / temp_w) weights).
    """
    ones = jnp.ones((1, u.shape[1]), jnp.float32)

    def mv(x):
        return lax.dot_general(
            ones, x,
            dimension_numbers=(((1,), (1,)), ((), ())),
            preferred_element_type=jnp.float32,
        )

    hi = u.astype(jnp.bfloat16).astype(jnp.float32)
    return mv(hi) + mv(u - hi)


# ---------------------------------------------------------------------------
# Pallas kernel
# ---------------------------------------------------------------------------
def _crossclr_kernel(v_ref, t_ref, iv_ref, it_ref, loss_ref, *,
                     temperature, temp_w, negative_w, thr):
    f32 = jnp.float32
    B = v_ref.shape[0]
    inv_b = 1.0 / B
    inv_temp = 1.0 / temperature

    # F.normalize(x, dim=1) with eps=1e-12:  x * rsqrt(max(||x||^2, eps^2))
    def l2norm(x):
        ss = jnp.sum(x * x, axis=1, keepdims=True)
        return x * lax.rsqrt(jnp.maximum(ss, 1e-24))

    vn = l2norm(v_ref[...].astype(f32))
    tn = l2norm(t_ref[...].astype(f32))

    # --- the only three (B,B) matmuls, fed in the inputs' native dtype ------
    mxu_dt = v_ref.dtype
    vn_m = vn.astype(mxu_dt)
    tn_m = tn.astype(mxu_dt)
    L = _mm_nt(vn_m, tn_m) * inv_temp     # logits_per_image; logits_per_text == L.T
    Lvv = _mm_nt(vn_m, vn_m) * inv_temp   # intra-video cluster logits (symmetric)
    Ltt = _mm_nt(tn_m, tn_m) * inv_temp   # intra-text  cluster logits (symmetric)

    rows = lax.broadcasted_iota(jnp.int32, (B, B), 0)
    cols = lax.broadcasted_iota(jnp.int32, (B, B), 1)
    is_diag = rows == cols                # boolean only; no f32 eye / pos_mask

    # --- per-sample mean off-diagonal raw similarity, with NO (B,B) matmul --
    #   avg_j = (x_j . sum_k x_k - ||x_j||^2) / B = sum_d x_jd * (s_d - x_jd) / B
    def avg_offdiag_sim(x_ref):
        x = x_ref[...].astype(f32)
        s = jnp.sum(x, axis=0, keepdims=True)              # (1, D)
        u = x * (s - x)                                    # (B, D)
        col = jnp.sum(u, axis=1, keepdims=True) * inv_b    # (B, 1) sublane-major
        row = _row_layout_rowsum(u) * inv_b                # (1, B) lane-major
        return col, row

    avg_vid_c, avg_vid_r = avg_offdiag_sim(iv_ref)
    avg_txt_c, avg_txt_r = avg_offdiag_sim(it_ref)

    # Positive (diagonal) logit, once, from (B,D) data, in both layouts.
    p = vn * tn
    diag_c = jnp.sum(p, axis=1, keepdims=True) * inv_temp   # (B, 1)
    diag_r = _row_layout_rowsum(p) * inv_temp                # (1, B)

    # ----------------------------- video branch ----------------------------
    # Rows of L are the softmax rows; columns are pruned / added as negatives
    # by the *video* scores (threshold re-expression of sort + fancy indexing).
    norm_vid = avg_vid_r / jnp.max(avg_vid_r, axis=1, keepdims=True)   # (1,B)
    keep_v = norm_vid <= thr          # column not pruned
    sel_v = norm_vid < thr            # column used as extra negative

    lp_v = jnp.where(jnp.logical_or(is_diag, keep_v), L, 0.0)
    nv = jnp.where(is_diag, 0.0, negative_w * Lvv)
    m_v = jnp.max(jnp.maximum(lp_v, jnp.where(sel_v, nv, 0.0)),
                  axis=1, keepdims=True)                               # (B,1), >= 0
    den_v = jnp.sum(jnp.exp(lp_v - m_v)
                    + jnp.where(sel_v, jnp.exp(nv - m_v), 0.0),
                    axis=1, keepdims=True)
    loss_rows_v = m_v + jnp.log(den_v) - diag_c                        # (B,1)

    w_v = avg_vid_c / jnp.sum(avg_vid_c, axis=0, keepdims=True)        # (B,1)
    e_v = jnp.exp((w_v - jnp.max(w_v, axis=0, keepdims=True)) / temp_w)  # shift cancels
    loss_i = (jnp.sum(loss_rows_v * e_v, axis=0, keepdims=True)
              / jnp.sum(e_v, axis=0, keepdims=True))                   # (1,1)

    # ------------------------------ text branch ----------------------------
    # logits_per_text == L.T, so the text branch consumes L column-wise
    # (axis=0 reductions); its per-sample masks broadcast as (B,1).
    norm_txt = avg_txt_c / jnp.max(avg_txt_c, axis=0, keepdims=True)   # (B,1)
    keep_t = norm_txt <= thr
    sel_t = norm_txt < thr

    lp_t = jnp.where(jnp.logical_or(is_diag, keep_t), L, 0.0)
    nt = jnp.where(is_diag, 0.0, negative_w * Ltt)
    m_t = jnp.max(jnp.maximum(lp_t, jnp.where(sel_t, nt, 0.0)),
                  axis=0, keepdims=True)                               # (1,B), >= 0
    den_t = jnp.sum(jnp.exp(lp_t - m_t)
                    + jnp.where(sel_t, jnp.exp(nt - m_t), 0.0),
                    axis=0, keepdims=True)
    loss_cols_t = m_t + jnp.log(den_t) - diag_r                        # (1,B)

    w_t = avg_txt_r / jnp.sum(avg_txt_r, axis=1, keepdims=True)        # (1,B)
    e_t = jnp.exp((w_t - jnp.max(w_t, axis=1, keepdims=True)) / temp_w)
    loss_t = (jnp.sum(loss_cols_t * e_t, axis=1, keepdims=True)
              / jnp.sum(e_t, axis=1, keepdims=True))                   # (1,1)

    loss_ref[...] = (loss_i + loss_t) * 0.5


# ---------------------------------------------------------------------------
# Wrapper
# ---------------------------------------------------------------------------
def crossclr_noq_loss(video_features, text_features, input_vid, input_txt,
                      temperature=0.03, temp_w=0.0035,
                      negative_w=0.8, score_threshold=0.7):
    kernel = functools.partial(
        _crossclr_kernel,
        temperature=float(temperature),
        temp_w=float(temp_w),
        negative_w=float(negative_w),
        thr=float(score_threshold),
    )
    b = int(video_features.shape[0])
    d_max = int(max(video_features.shape[1], input_vid.shape[1]))
    # Peak live set ~ a handful of (B,B) f32 temporaries plus the (B,D)
    # operands; raise the scoped-VMEM limit above the 16/32 MiB defaults,
    # capped at the 64 MiB v7x physical floor.
    # TODO(synk): beyond that cap, switch to the row-tiled grid variant.
    est = (12 * b * b + 24 * b * d_max) * 4 + (2 << 20)
    vmem_limit = int(min(max(est, 32 << 20), 64 << 20))

    out = pl.pallas_call(
        kernel,
        out_shape=jax.ShapeDtypeStruct((1, 1), jnp.float32),
        in_specs=[pl.BlockSpec(memory_space=pltpu.MemorySpace.VMEM)
                  for _ in range(4)],
        out_specs=pl.BlockSpec(memory_space=pltpu.MemorySpace.VMEM),
        compiler_params=pltpu.CompilerParams(vmem_limit_bytes=vmem_limit),
    )(video_features, text_features, input_vid, input_txt)
    return out[0, 0]


# ---------------------------------------------------------------------------
# Pure-numpy reference mirroring the PyTorch forward literally (with sort +
# dynamic fancy indexing) -- used only to validate the kernel's reformulation.
# ---------------------------------------------------------------------------
def _reference_numpy(video, text, iv, it, temperature=0.03, temp_w=0.0035,
                     negative_w=0.8, thr=0.7):
    v = np.asarray(video, np.float64)
    t = np.asarray(text, np.float64)
    iv = np.asarray(iv, np.float64)
    it = np.asarray(it, np.float64)

    def norm(x):
        n = np.linalg.norm(x, axis=1, keepdims=True)
        return x / np.maximum(n, 1e-12)

    v, t = norm(v), norm(t)
    B = v.shape[0]
    l_vt = v @ t.T / temperature
    l_tv = t @ v.T / temperature
    l_vv = v @ v.T / temperature
    l_tt = t @ t.T / temperature
    pos = 1.0 - np.eye(B)
    sv = (iv @ iv.T) * pos
    st = (it @ it.T) * pos
    av, at = sv.mean(1), st.mean(1)

    def branch(l_cross, l_clstr, avg):
        order = np.argsort(avg, kind="stable")
        srt = avg[order]
        srt_n = srt / srt.max()
        idx_neg = order[srt_n < thr]
        idx_pos = order[srt_n > thr]
        clstr = l_clstr * pos
        negatives = clstr[:, idx_neg]
        mask_pr = np.ones_like(l_cross)
        mask_pr[:, idx_pos] = 0.0
        np.fill_diagonal(mask_pr, 1.0)
        lp = l_cross * mask_pr
        logits = np.concatenate([lp, negative_w * negatives], axis=1)
        tgt_mask = np.concatenate([np.eye(B), np.zeros_like(negatives)], axis=1)
        m = logits.max(1, keepdims=True)
        sm = np.exp(logits - m)
        sm /= sm.sum(1, keepdims=True)
        loss = -np.log((sm * tgt_mask).sum(1))
        w = avg / avg.sum()
        e = np.exp(w / temp_w)
        return (loss * e).sum() / e.sum()

    return (branch(l_vt, l_vv, av) + branch(l_tv, l_tt, at)) / 2.0


# ---------------------------------------------------------------------------
if __name__ == "__main__":
    key = jax.random.PRNGKey(0)
    k1, k2, k3, k4 = jax.random.split(key, 4)
    # Small but hardware-friendly demo shapes: feature (lane) dim = 128,
    # batch (sublane) dim = 8.
    B, D, Din = 8, 128, 128

    video_features = jax.random.normal(k1, (B, D), jnp.float32)
    text_features = jax.random.normal(k2, (B, D), jnp.float32)
    # positive raw feature sims (like real embedding activations)
    input_vid = jax.random.uniform(k3, (B, Din), jnp.float32)
    input_txt = jax.random.uniform(k4, (B, Din), jnp.float32)

    # Module parameter from __init__ (logit_scale) is unused in forward.

    loss = jax.block_until_ready(
        crossclr_noq_loss(video_features, text_features, input_vid, input_txt))
    ref = _reference_numpy(video_features, text_features, input_vid, input_txt)

    assert bool(jnp.isfinite(loss)), f"non-finite loss: {loss}"
    # f32 matmuls on the MXU are decomposed into bf16 passes, so allow ~1%
    # relative error on the scalar loss vs. the float64 reference.
    assert np.allclose(np.float64(loss), ref, rtol=1e-2, atol=1e-2), (loss, ref)

    # bf16 fast path (bf16 MXU operands, halved operand VMEM); smoke test.
    loss_bf16 = jax.block_until_ready(crossclr_noq_loss(
        video_features.astype(jnp.bfloat16), text_features.astype(jnp.bfloat16),
        input_vid.astype(jnp.bfloat16), input_txt.astype(jnp.bfloat16)))
    assert bool(jnp.isfinite(loss_bf16)), f"non-finite bf16 loss: {loss_bf16}"

    print("KERNEL_OK")
</pallas_src>

<mosaic_0001>
module attributes {stable_mosaic.version = 11 : i64} {
  func.func @_crossclr_kernel(%arg0: memref<8x128xf32, #tpu.memory_space<vmem>>, %arg1: memref<8x128xf32, #tpu.memory_space<vmem>>, %arg2: memref<8x128xf32, #tpu.memory_space<vmem>>, %arg3: memref<8x128xf32, #tpu.memory_space<vmem>>, %arg4: memref<1x1xf32, #tpu.memory_space<vmem>>) attributes {dimension_semantics = [], scalar_prefetch = 0 : i64, scratch_operands = 0 : i64, tpu.core_type = #tpu.core_type<tc>} {
    %c0 = arith.constant 0 : index
    %c0_0 = arith.constant 0 : index
    %0 = vector.load %arg0[%c0, %c0_0] : memref<8x128xf32, #tpu.memory_space<vmem>>, vector<8x128xf32>
    %1 = arith.mulf %0, %0 : vector<8x128xf32>
    %cst = arith.constant dense<0.000000e+00> : vector<8xf32>
    %2 = vector.multi_reduction <add>, %1, %cst [1] : vector<8x128xf32> to vector<8xf32>
    %3 = vector.shape_cast %2 : vector<8xf32> to vector<8x1xf32>
    %cst_1 = arith.constant 1.000000e-24 : f32
    %4 = vector.broadcast %cst_1 : f32 to vector<8x1xf32>
    %5 = arith.maximumf %3, %4 : vector<8x1xf32>
    %6 = math.rsqrt %5 : vector<8x1xf32>
    %7 = vector.broadcast %6 : vector<8x1xf32> to vector<8x128xf32>
    %8 = arith.mulf %0, %7 : vector<8x128xf32>
    %c0_2 = arith.constant 0 : index
    %c0_3 = arith.constant 0 : index
    %9 = vector.load %arg1[%c0_2, %c0_3] : memref<8x128xf32, #tpu.memory_space<vmem>>, vector<8x128xf32>
    %10 = arith.mulf %9, %9 : vector<8x128xf32>
    %cst_4 = arith.constant dense<0.000000e+00> : vector<8xf32>
    %11 = vector.multi_reduction <add>, %10, %cst_4 [1] : vector<8x128xf32> to vector<8xf32>
    %12 = vector.shape_cast %11 : vector<8xf32> to vector<8x1xf32>
    %cst_5 = arith.constant 1.000000e-24 : f32
    %13 = vector.broadcast %cst_5 : f32 to vector<8x1xf32>
    %14 = arith.maximumf %12, %13 : vector<8x1xf32>
    %15 = math.rsqrt %14 : vector<8x1xf32>
    %16 = vector.broadcast %15 : vector<8x1xf32> to vector<8x128xf32>
    %17 = arith.mulf %9, %16 : vector<8x128xf32>
    %cst_6 = arith.constant dense<0.000000e+00> : vector<8x8xf32>
    %18 = tpu.matmul %8, %17, %cst_6 {dimension_numbers = #tpu.dot_dimension_numbers<[1], [1], [0], [0], [0, 0, 1, 0], [], []>} : vector<8x128xf32>, vector<8x128xf32>, vector<8x8xf32> -> vector<8x8xf32>
    %cst_7 = arith.constant 33.3333321 : f32
    %19 = vector.broadcast %cst_7 : f32 to vector<8x8xf32>
    %20 = arith.mulf %18, %19 : vector<8x8xf32>
    %cst_8 = arith.constant dense<0.000000e+00> : vector<8x8xf32>
    %21 = tpu.matmul %8, %8, %cst_8 {dimension_numbers = #tpu.dot_dimension_numbers<[1], [1], [0], [0], [0, 0, 1, 0], [], []>} : vector<8x128xf32>, vector<8x128xf32>, vector<8x8xf32> -> vector<8x8xf32>
    %cst_9 = arith.constant 33.3333321 : f32
    %22 = vector.broadcast %cst_9 : f32 to vector<8x8xf32>
    %23 = arith.mulf %21, %22 : vector<8x8xf32>
    %cst_10 = arith.constant dense<0.000000e+00> : vector<8x8xf32>
    %24 = tpu.matmul %17, %17, %cst_10 {dimension_numbers = #tpu.dot_dimension_numbers<[1], [1], [0], [0], [0, 0, 1, 0], [], []>} : vector<8x128xf32>, vector<8x128xf32>, vector<8x8xf32> -> vector<8x8xf32>
    %cst_11 = arith.constant 33.3333321 : f32
    %25 = vector.broadcast %cst_11 : f32 to vector<8x8xf32>
    %26 = arith.mulf %24, %25 : vector<8x8xf32>
    %27 = tpu.iota {dimensions = array<i32: 0>} : vector<8x8xi32>
    %28 = tpu.iota {dimensions = array<i32: 1>} : vector<8x8xi32>
    %29 = arith.cmpi eq, %27, %28 : vector<8x8xi32>
    %c0_12 = arith.constant 0 : index
    %c0_13 = arith.constant 0 : index
    %30 = vector.load %arg2[%c0_12, %c0_13] : memref<8x128xf32, #tpu.memory_space<vmem>>, vector<8x128xf32>
    %cst_14 = arith.constant dense<0.000000e+00> : vector<128xf32>
    %31 = vector.multi_reduction <add>, %30, %cst_14 [0] : vector<8x128xf32> to vector<128xf32>
    %32 = vector.shape_cast %31 : vector<128xf32> to vector<1x128xf32>
    %33 = vector.broadcast %32 : vector<1x128xf32> to vector<8x128xf32>
    %34 = arith.subf %33, %30 : vector<8x128xf32>
    %35 = arith.mulf %30, %34 : vector<8x128xf32>
    %cst_15 = arith.constant dense<0.000000e+00> : vector<8xf32>
    %36 = vector.multi_reduction <add>, %35, %cst_15 [1] : vector<8x128xf32> to vector<8xf32>
    %37 = vector.shape_cast %36 : vector<8xf32> to vector<8x1xf32>
    %cst_16 = arith.constant 1.250000e-01 : f32
    %38 = vector.broadcast %cst_16 : f32 to vector<8x1xf32>
    %39 = arith.mulf %37, %38 : vector<8x1xf32>
    %cst_17 = arith.constant 1.000000e+00 : f32
    %40 = vector.broadcast %cst_17 : f32 to vector<1x128xf32>
    %41 = arith.truncf %35 : vector<8x128xf32> to vector<8x128xbf16>
    %42 = arith.extf %41 : vector<8x128xbf16> to vector<8x128xf32>
    %cst_18 = arith.constant dense<0.000000e+00> : vector<1x8xf32>
    %43 = tpu.matmul %40, %42, %cst_18 {dimension_numbers = #tpu.dot_dimension_numbers<[1], [1], [0], [0], [0, 0, 1, 0], [], []>} : vector<1x128xf32>, vector<8x128xf32>, vector<1x8xf32> -> vector<1x8xf32>
    %44 = arith.subf %35, %42 : vector<8x128xf32>
    %cst_19 = arith.constant dense<0.000000e+00> : vector<1x8xf32>
    %45 = tpu.matmul %40, %44, %cst_19 {dimension_numbers = #tpu.dot_dimension_numbers<[1], [1], [0], [0], [0, 0, 1, 0], [], []>} : vector<1x128xf32>, vector<8x128xf32>, vector<1x8xf32> -> vector<1x8xf32>
    %46 = arith.addf %43, %45 : vector<1x8xf32>
    %cst_20 = arith.constant 1.250000e-01 : f32
    %47 = vector.broadcast %cst_20 : f32 to vector<1x8xf32>
    %48 = arith.mulf %46, %47 : vector<1x8xf32>
    %c0_21 = arith.constant 0 : index
    %c0_22 = arith.constant 0 : index
    %49 = vector.load %arg3[%c0_21, %c0_22] : memref<8x128xf32, #tpu.memory_space<vmem>>, vector<8x128xf32>
    %cst_23 = arith.constant dense<0.000000e+00> : vector<128xf32>
    %50 = vector.multi_reduction <add>, %49, %cst_23 [0] : vector<8x128xf32> to vector<128xf32>
    %51 = vector.shape_cast %50 : vector<128xf32> to vector<1x128xf32>
    %52 = vector.broadcast %51 : vector<1x128xf32> to vector<8x128xf32>
    %53 = arith.subf %52, %49 : vector<8x128xf32>
    %54 = arith.mulf %49, %53 : vector<8x128xf32>
    %cst_24 = arith.constant dense<0.000000e+00> : vector<8xf32>
    %55 = vector.multi_reduction <add>, %54, %cst_24 [1] : vector<8x128xf32> to vector<8xf32>
    %56 = vector.shape_cast %55 : vector<8xf32> to vector<8x1xf32>
    %cst_25 = arith.constant 1.250000e-01 : f32
    %57 = vector.broadcast %cst_25 : f32 to vector<8x1xf32>
    %58 = arith.mulf %56, %57 : vector<8x1xf32>
    %cst_26 = arith.constant 1.000000e+00 : f32
    %59 = vector.broadcast %cst_26 : f32 to vector<1x128xf32>
    %60 = arith.truncf %54 : vector<8x128xf32> to vector<8x128xbf16>
    %61 = arith.extf %60 : vector<8x128xbf16> to vector<8x128xf32>
    %cst_27 = arith.constant dense<0.000000e+00> : vector<1x8xf32>
    %62 = tpu.matmul %59, %61, %cst_27 {dimension_numbers = #tpu.dot_dimension_numbers<[1], [1], [0], [0], [0, 0, 1, 0], [], []>} : vector<1x128xf32>, vector<8x128xf32>, vector<1x8xf32> -> vector<1x8xf32>
    %63 = arith.subf %54, %61 : vector<8x128xf32>
    %cst_28 = arith.constant dense<0.000000e+00> : vector<1x8xf32>
    %64 = tpu.matmul %59, %63, %cst_28 {dimension_numbers = #tpu.dot_dimension_numbers<[1], [1], [0], [0], [0, 0, 1, 0], [], []>} : vector<1x128xf32>, vector<8x128xf32>, vector<1x8xf32> -> vector<1x8xf32>
    %65 = arith.addf %62, %64 : vector<1x8xf32>
    %cst_29 = arith.constant 1.250000e-01 : f32
    %66 = vector.broadcast %cst_29 : f32 to vector<1x8xf32>
    %67 = arith.mulf %65, %66 : vector<1x8xf32>
    %68 = arith.mulf %8, %17 : vector<8x128xf32>
    %cst_30 = arith.constant dense<0.000000e+00> : vector<8xf32>
    %69 = vector.multi_reduction <add>, %68, %cst_30 [1] : vector<8x128xf32> to vector<8xf32>
    %70 = vector.shape_cast %69 : vector<8xf32> to vector<8x1xf32>
    %cst_31 = arith.constant 33.3333321 : f32
    %71 = vector.broadcast %cst_31 : f32 to vector<8x1xf32>
    %72 = arith.mulf %70, %71 : vector<8x1xf32>
    %cst_32 = arith.constant 1.000000e+00 : f32
    %73 = vector.broadcast %cst_32 : f32 to vector<1x128xf32>
    %74 = arith.truncf %68 : vector<8x128xf32> to vector<8x128xbf16>
    %75 = arith.extf %74 : vector<8x128xbf16> to vector<8x128xf32>
    %cst_33 = arith.constant dense<0.000000e+00> : vector<1x8xf32>
    %76 = tpu.matmul %73, %75, %cst_33 {dimension_numbers = #tpu.dot_dimension_numbers<[1], [1], [0], [0], [0, 0, 1, 0], [], []>} : vector<1x128xf32>, vector<8x128xf32>, vector<1x8xf32> -> vector<1x8xf32>
    %77 = arith.subf %68, %75 : vector<8x128xf32>
    %cst_34 = arith.constant dense<0.000000e+00> : vector<1x8xf32>
    %78 = tpu.matmul %73, %77, %cst_34 {dimension_numbers = #tpu.dot_dimension_numbers<[1], [1], [0], [0], [0, 0, 1, 0], [], []>} : vector<1x128xf32>, vector<8x128xf32>, vector<1x8xf32> -> vector<1x8xf32>
    %79 = arith.addf %76, %78 : vector<1x8xf32>
    %cst_35 = arith.constant 33.3333321 : f32
    %80 = vector.broadcast %cst_35 : f32 to vector<1x8xf32>
    %81 = arith.mulf %79, %80 : vector<1x8xf32>
    %cst_36 = arith.constant dense<0xFF800000> : vector<1xf32>
    %82 = vector.multi_reduction <maximumf>, %48, %cst_36 [1] : vector<1x8xf32> to vector<1xf32>
    %83 = vector.shape_cast %82 : vector<1xf32> to vector<1x1xf32>
    %84 = vector.broadcast %83 : vector<1x1xf32> to vector<1x8xf32>
    %85 = arith.divf %48, %84 : vector<1x8xf32>
    %cst_37 = arith.constant 0.699999988 : f32
    %86 = vector.broadcast %cst_37 : f32 to vector<1x8xf32>
    %87 = arith.cmpf ole, %85, %86 : vector<1x8xf32>
    %cst_38 = arith.constant 0.699999988 : f32
    %88 = vector.broadcast %cst_38 : f32 to vector<1x8xf32>
    %89 = arith.cmpf olt, %85, %88 : vector<1x8xf32>
    %90 = vector.broadcast %87 : vector<1x8xi1> to vector<8x8xi1>
    %91 = arith.ori %29, %90 : vector<8x8xi1>
    %cst_39 = arith.constant 0.000000e+00 : f32
    %92 = vector.broadcast %cst_39 : f32 to vector<8x8xf32>
    %93 = arith.select %91, %20, %92 : vector<8x8xi1>, vector<8x8xf32>
    %cst_40 = arith.constant 8.000000e-01 : f32
    %94 = vector.broadcast %cst_40 : f32 to vector<8x8xf32>
    %95 = arith.mulf %94, %23 : vector<8x8xf32>
    %cst_41 = arith.constant 0.000000e+00 : f32
    %96 = vector.broadcast %cst_41 : f32 to vector<8x8xf32>
    %97 = arith.select %29, %96, %95 : vector<8x8xi1>, vector<8x8xf32>
    %cst_42 = arith.constant 0.000000e+00 : f32
    %98 = vector.shape_cast %89 : vector<1x8xi1> to vector<1x8xi1>
    %99 = vector.broadcast %98 : vector<1x8xi1> to vector<8x8xi1>
    %100 = vector.broadcast %cst_42 : f32 to vector<8x8xf32>
    %101 = arith.select %99, %97, %100 : vector<8x8xi1>, vector<8x8xf32>
    %102 = arith.maximumf %93, %101 : vector<8x8xf32>
    %cst_43 = arith.constant dense<0xFF800000> : vector<8xf32>
    %103 = vector.multi_reduction <maximumf>, %102, %cst_43 [1] : vector<8x8xf32> to vector<8xf32>
    %104 = vector.shape_cast %103 : vector<8xf32> to vector<8x1xf32>
    %105 = vector.broadcast %104 : vector<8x1xf32> to vector<8x8xf32>
    %106 = arith.subf %93, %105 : vector<8x8xf32>
    %107 = math.exp %106 : vector<8x8xf32>
    %108 = vector.broadcast %104 : vector<8x1xf32> to vector<8x8xf32>
    %109 = arith.subf %97, %108 : vector<8x8xf32>
    %110 = math.exp %109 : vector<8x8xf32>
    %cst_44 = arith.constant 0.000000e+00 : f32
    %111 = vector.shape_cast %89 : vector<1x8xi1> to vector<1x8xi1>
    %112 = vector.broadcast %111 : vector<1x8xi1> to vector<8x8xi1>
    %113 = vector.broadcast %cst_44 : f32 to vector<8x8xf32>
    %114 = arith.select %112, %110, %113 : vector<8x8xi1>, vector<8x8xf32>
    %115 = arith.addf %107, %114 : vector<8x8xf32>
    %cst_45 = arith.constant dense<0.000000e+00> : vector<8xf32>
    %116 = vector.multi_reduction <add>, %115, %cst_45 [1] : vector<8x8xf32> to vector<8xf32>
    %117 = vector.shape_cast %116 : vector<8xf32> to vector<8x1xf32>
    %118 = math.log %117 : vector<8x1xf32>
    %119 = arith.addf %104, %118 : vector<8x1xf32>
    %120 = arith.subf %119, %72 : vector<8x1xf32>
    %cst_46 = arith.constant dense<0.000000e+00> : vector<1xf32>
    %121 = vector.multi_reduction <add>, %39, %cst_46 [0] : vector<8x1xf32> to vector<1xf32>
    %122 = vector.shape_cast %121 : vector<1xf32> to vector<1x1xf32>
    %123 = vector.broadcast %122 : vector<1x1xf32> to vector<8x1xf32>
    %124 = arith.divf %39, %123 : vector<8x1xf32>
    %cst_47 = arith.constant dense<0xFF800000> : vector<1xf32>
    %125 = vector.multi_reduction <maximumf>, %124, %cst_47 [0] : vector<8x1xf32> to vector<1xf32>
    %126 = vector.shape_cast %125 : vector<1xf32> to vector<1x1xf32>
    %127 = vector.broadcast %126 : vector<1x1xf32> to vector<8x1xf32>
    %128 = arith.subf %124, %127 : vector<8x1xf32>
    %cst_48 = arith.constant 3.500000e-03 : f32
    %129 = vector.broadcast %cst_48 : f32 to vector<8x1xf32>
    %130 = arith.divf %128, %129 : vector<8x1xf32>
    %131 = math.exp %130 : vector<8x1xf32>
    %132 = arith.mulf %120, %131 : vector<8x1xf32>
    %cst_49 = arith.constant dense<0.000000e+00> : vector<1xf32>
    %133 = vector.multi_reduction <add>, %132, %cst_49 [0] : vector<8x1xf32> to vector<1xf32>
    %134 = vector.shape_cast %133 : vector<1xf32> to vector<1x1xf32>
    %cst_50 = arith.constant dense<0.000000e+00> : vector<1xf32>
    %135 = vector.multi_reduction <add>, %131, %cst_50 [0] : vector<8x1xf32> to vector<1xf32>
    %136 = vector.shape_cast %135 : vector<1xf32> to vector<1x1xf32>
    %137 = arith.divf %134, %136 : vector<1x1xf32>
    %cst_51 = arith.constant dense<0xFF800000> : vector<1xf32>
    %138 = vector.multi_reduction <maximumf>, %58, %cst_51 [0] : vector<8x1xf32> to vector<1xf32>
    %139 = vector.shape_cast %138 : vector<1xf32> to vector<1x1xf32>
    %140 = vector.broadcast %139 : vector<1x1xf32> to vector<8x1xf32>
    %141 = arith.divf %58, %140 : vector<8x1xf32>
    %cst_52 = arith.constant 0.699999988 : f32
    %142 = vector.broadcast %cst_52 : f32 to vector<8x1xf32>
    %143 = arith.cmpf ole, %141, %142 : vector<8x1xf32>
    %cst_53 = arith.constant 0.699999988 : f32
    %144 = vector.broadcast %cst_53 : f32 to vector<8x1xf32>
    %145 = arith.cmpf olt, %141, %144 : vector<8x1xf32>
    %146 = vector.broadcast %143 : vector<8x1xi1> to vector<8x8xi1>
    %147 = arith.ori %29, %146 : vector<8x8xi1>
    %cst_54 = arith.constant 0.000000e+00 : f32
    %148 = vector.broadcast %cst_54 : f32 to vector<8x8xf32>
    %149 = arith.select %147, %20, %148 : vector<8x8xi1>, vector<8x8xf32>
    %cst_55 = arith.constant 8.000000e-01 : f32
    %150 = vector.broadcast %cst_55 : f32 to vector<8x8xf32>
    %151 = arith.mulf %150, %26 : vector<8x8xf32>
    %cst_56 = arith.constant 0.000000e+00 : f32
    %152 = vector.broadcast %cst_56 : f32 to vector<8x8xf32>
    %153 = arith.select %29, %152, %151 : vector<8x8xi1>, vector<8x8xf32>
    %cst_57 = arith.constant 0.000000e+00 : f32
    %154 = vector.shape_cast %145 : vector<8x1xi1> to vector<8x1xi1>
    %155 = vector.broadcast %154 : vector<8x1xi1> to vector<8x8xi1>
    %156 = vector.broadcast %cst_57 : f32 to vector<8x8xf32>
    %157 = arith.select %155, %153, %156 : vector<8x8xi1>, vector<8x8xf32>
    %158 = arith.maximumf %149, %157 : vector<8x8xf32>
    %cst_58 = arith.constant dense<0xFF800000> : vector<8xf32>
    %159 = vector.multi_reduction <maximumf>, %158, %cst_58 [0] : vector<8x8xf32> to vector<8xf32>
    %160 = vector.shape_cast %159 : vector<8xf32> to vector<1x8xf32>
    %161 = vector.broadcast %160 : vector<1x8xf32> to vector<8x8xf32>
    %162 = arith.subf %149, %161 : vector<8x8xf32>
    %163 = math.exp %162 : vector<8x8xf32>
    %164 = vector.broadcast %160 : vector<1x8xf32> to vector<8x8xf32>
    %165 = arith.subf %153, %164 : vector<8x8xf32>
    %166 = math.exp %165 : vector<8x8xf32>
    %cst_59 = arith.constant 0.000000e+00 : f32
    %167 = vector.shape_cast %145 : vector<8x1xi1> to vector<8x1xi1>
    %168 = vector.broadcast %167 : vector<8x1xi1> to vector<8x8xi1>
    %169 = vector.broadcast %cst_59 : f32 to vector<8x8xf32>
    %170 = arith.select %168, %166, %169 : vector<8x8xi1>, vector<8x8xf32>
    %171 = arith.addf %163, %170 : vector<8x8xf32>
    %cst_60 = arith.constant dense<0.000000e+00> : vector<8xf32>
    %172 = vector.multi_reduction <add>, %171, %cst_60 [0] : vector<8x8xf32> to vector<8xf32>
    %173 = vector.shape_cast %172 : vector<8xf32> to vector<1x8xf32>
    %174 = math.log %173 : vector<1x8xf32>
    %175 = arith.addf %160, %174 : vector<1x8xf32>
    %176 = arith.subf %175, %81 : vector<1x8xf32>
    %cst_61 = arith.constant dense<0.000000e+00> : vector<1xf32>
    %177 = vector.multi_reduction <add>, %67, %cst_61 [1] : vector<1x8xf32> to vector<1xf32>
    %178 = vector.shape_cast %177 : vector<1xf32> to vector<1x1xf32>
    %179 = vector.broadcast %178 : vector<1x1xf32> to vector<1x8xf32>
    %180 = arith.divf %67, %179 : vector<1x8xf32>
    %cst_62 = arith.constant dense<0xFF800000> : vector<1xf32>
    %181 = vector.multi_reduction <maximumf>, %180, %cst_62 [1] : vector<1x8xf32> to vector<1xf32>
    %182 = vector.shape_cast %181 : vector<1xf32> to vector<1x1xf32>
    %183 = vector.broadcast %182 : vector<1x1xf32> to vector<1x8xf32>
    %184 = arith.subf %180, %183 : vector<1x8xf32>
    %cst_63 = arith.constant 3.500000e-03 : f32
    %185 = vector.broadcast %cst_63 : f32 to vector<1x8xf32>
    %186 = arith.divf %184, %185 : vector<1x8xf32>
    %187 = math.exp %186 : vector<1x8xf32>
    %188 = arith.mulf %176, %187 : vector<1x8xf32>
    %cst_64 = arith.constant dense<0.000000e+00> : vector<1xf32>
    %189 = vector.multi_reduction <add>, %188, %cst_64 [1] : vector<1x8xf32> to vector<1xf32>
    %190 = vector.shape_cast %189 : vector<1xf32> to vector<1x1xf32>
    %cst_65 = arith.constant dense<0.000000e+00> : vector<1xf32>
    %191 = vector.multi_reduction <add>, %187, %cst_65 [1] : vector<1x8xf32> to vector<1xf32>
    %192 = vector.shape_cast %191 : vector<1xf32> to vector<1x1xf32>
    %193 = arith.divf %190, %192 : vector<1x1xf32>
    %194 = arith.addf %137, %193 : vector<1x1xf32>
    %cst_66 = arith.constant 5.000000e-01 : f32
    %195 = vector.broadcast %cst_66 : f32 to vector<1x1xf32>
    %196 = arith.mulf %194, %195 : vector<1x1xf32>
    %c0_67 = arith.constant 0 : index
    %c0_68 = arith.constant 0 : index
    %197 = vector.load %arg4[%c0_67, %c0_68] : memref<1x1xf32, #tpu.memory_space<vmem>>, vector<1x1xf32>
    tpu.vector_store %arg4[%c0_67, %c0_68], %196 {strides = array<i32>} : memref<1x1xf32, #tpu.memory_space<vmem>>, vector<1x1xf32>,
    return
  }
}

</mosaic_0001>

<llo_original>
// kernel: tpu_custom_call.1
$region0: #{tpu_custom_call.1}
  #allocation0 [shape = 'u32[]', space=smem, size = 0x4, offset = 0x4, fixed_abs, tag = 'smem constant byte address 0x4 - core index']
  #allocation1 [shape = 'u32[72,128]{1,0:T(1,128)}', space=vmem, size = 0x9000, scoped, tag = 'internal scratch']
  %s0 = inlined_call_operand.hbm [shape: f32[8,128], index: 0, kind: input, shape index: {}]
  %s1 = inlined_call_operand.hbm [shape: f32[8,128], index: 1, kind: input, shape index: {}]
  %s2 = inlined_call_operand.hbm [shape: f32[8,128], index: 2, kind: input, shape index: {}]
  %s3 = inlined_call_operand.hbm [shape: f32[8,128], index: 3, kind: input, shape index: {}]
  %s4 = inlined_call_operand.hbm [shape: f32[1,1], index: 4, kind: output, shape index: {}]
  %s5 = sld [smem:[#allocation0]]
  $region42: #{tpu_custom_call.1} parent=0
    _
  %s7 = ssub.s32 1, %s5
  %s8 = scalar_select 0, %s7, %s5
  $region1: #{tpu_custom_call.1} parent=0
    #allocation2 [shape = 'u8[4096]{0}', space=vmem, size = 0x1000, scoped, tag = 'input window, operand 0, single buffered']
    #allocation3 [shape = 's32[1]{0}', space=sflag, size = 0x4, scoped, tag = 'scoped memory for tpu_custom_call.1']
    #allocation4 [shape = 's32[1]{0}', space=sflag, size = 0x4, scoped, tag = 'scoped memory for tpu_custom_call.1']
    #allocation5 [shape = 'u8[4096]{0}', space=vmem, size = 0x1000, scoped, tag = 'input window, operand 1, single buffered']
    #allocation6 [shape = 's32[1]{0}', space=sflag, size = 0x4, scoped, tag = 'scoped memory for tpu_custom_call.1']
    #allocation7 [shape = 'u8[4096]{0}', space=vmem, size = 0x1000, scoped, tag = 'input window, operand 2, single buffered']
    #allocation8 [shape = 'u8[4096]{0}', space=vmem, size = 0x1000, scoped, tag = 'input window, operand 3, single buffered']
    #allocation9 [shape = 's32[1]{0}', space=sflag, size = 0x4, scoped, tag = 'scoped memory for tpu_custom_call.1']
    #allocation10 [shape = 'u8[512]{0}', space=vmem, size = 0x400, scoped, tag = 'output window, operand 0, single buffered']
    %9 = vsyncpa [#allocation3], 0
    %10 = vsyncpa [#allocation6], 0
    %11 = vsyncpa [#allocation9], 0
    %12 = vsyncpa [#allocation4], 0
    // Predicated region
    $region2: #{tpu_custom_call.1} parent=1 // pred_check
      _
    $region3: #{tpu_custom_call.1} parent=1 // pred_check_branch
      %14 = sbr.rel (0) target = $region5
    $region4: #{tpu_custom_call.1} parent=1 // pred_region
      %16 = vsyncadd [#allocation3], 0
      %s18 = sshll.u32 %s0, 4
      %s19 = int_to_ptr.hbm [resolvable:$true] %s18
      %s20 = sshll.u32 [#allocation2], 4
      %s21 = int_to_ptr.vmem [resolvable:$true] %s20
      %23 = dma.hbm_to_vmem [thread:$0]  %s19, 128, %s21, [#allocation3]
    $region5: #{tpu_custom_call.1} parent=1 // pred_fallthru
      _
    // Predicated region
    $region6: #{tpu_custom_call.1} parent=1 // pred_check
      _
    $region7: #{tpu_custom_call.1} parent=1 // pred_check_branch
      %25 = sbr.rel (0) target = $region9
    $region8: #{tpu_custom_call.1} parent=1 // pred_region
      %27 = vsyncadd [#allocation6], 0
      %s29 = sshll.u32 %s1, 4
      %s30 = int_to_ptr.hbm [resolvable:$true] %s29
      %s31 = sshll.u32 [#allocation5], 4
      %s32 = int_to_ptr.vmem [resolvable:$true] %s31
      %34 = dma.hbm_to_vmem [thread:$0]  %s30, 128, %s32, [#allocation6]
    $region9: #{tpu_custom_call.1} parent=1 // pred_fallthru
      _
    // Predicated region
    $region10: #{tpu_custom_call.1} parent=1 // pred_check
      _
    $region11: #{tpu_custom_call.1} parent=1 // pred_check_branch
      %36 = sbr.rel (0) target = $region13
    $region12: #{tpu_custom_call.1} parent=1 // pred_region
      %38 = vsyncadd [#allocation6], 0
      %s40 = sshll.u32 %s2, 4
      %s41 = int_to_ptr.hbm [resolvable:$true] %s40
      %s42 = sshll.u32 [#allocation7], 4
      %s43 = int_to_ptr.vmem [resolvable:$true] %s42
      %45 = dma.hbm_to_vmem [thread:$0]  %s41, 128, %s43, [#allocation6]
    $region13: #{tpu_custom_call.1} parent=1 // pred_fallthru
      _
    // Predicated region
    $region14: #{tpu_custom_call.1} parent=1 // pred_check
      _
    $region15: #{tpu_custom_call.1} parent=1 // pred_check_branch
      %47 = sbr.rel (0) target = $region17
    $region16: #{tpu_custom_call.1} parent=1 // pred_region
      %49 = vsyncadd [#allocation9], 0
      %s51 = sshll.u32 %s3, 4
      %s52 = int_to_ptr.hbm [resolvable:$true] %s51
      %s53 = sshll.u32 [#allocation8], 4
      %s54 = int_to_ptr.vmem [resolvable:$true] %s53
      %56 = dma.hbm_to_vmem [thread:$0]  %s52, 128, %s54, [#allocation9]
    $region17: #{tpu_custom_call.1} parent=1 // pred_fallthru
      _
    // Predicated region
    $region18: #{tpu_custom_call.1} parent=1 // pred_check
      _
    $region19: #{tpu_custom_call.1} parent=1 // pred_check_branch
      %58 = sbr.rel (0) target = $region21
    $region20: #{tpu_custom_call.1} parent=1 // pred_region
      %60 = dma.done [#allocation3], 128
    $region21: #{tpu_custom_call.1} parent=1 // pred_fallthru
      _
    // Predicated region
    $region22: #{tpu_custom_call.1} parent=1 // pred_check
      _
    $region23: #{tpu_custom_call.1} parent=1 // pred_check_branch
      %62 = sbr.rel (0) target = $region25
    $region24: #{tpu_custom_call.1} parent=1 // pred_region
      %64 = dma.done [#allocation6], 128
    $region25: #{tpu_custom_call.1} parent=1 // pred_fallthru
      _
    // Predicated region
    $region26: #{tpu_custom_call.1} parent=1 // pred_check
      _
    $region27: #{tpu_custom_call.1} parent=1 // pred_check_branch
      %66 = sbr.rel (0) target = $region29
    $region28: #{tpu_custom_call.1} parent=1 // pred_region
      %68 = dma.done [#allocation6], 128
    $region29: #{tpu_custom_call.1} parent=1 // pred_fallthru
      _
    // Predicated region
    $region30: #{tpu_custom_call.1} parent=1 // pred_check
      _
    $region31: #{tpu_custom_call.1} parent=1 // pred_check_branch
      %70 = sbr.rel (0) target = $region33
    $region32: #{tpu_custom_call.1} parent=1 // pred_region
      %72 = dma.done [#allocation9], 128
    $region33: #{tpu_custom_call.1} parent=1 // pred_fallthru
      _
    %v73 = vld [vmem:[#allocation2] sm:$0xff]
    %v74 = vmul.f32 %v73, %v73
    %75 = vadd.xlane.f32.xlu0 %v74
    %v76 = vpop.xlane.xlu0 %75
    %v77 = vmax.f32 %v76, 1e-24
    %v78 = vrsqrt.pop %v77
    %v79 = vmul.f32 %v78, %v77
    %v80 = vmul.f32 %v79, %v78
    %v81 = vmul.f32 0.5, %v80
    %v82 = vsub.f32 1.5, %v81
    %v83 = vmul.f32 %v78, %v82
    %vm84 = vweird.f32 %v77
    %vm85 = vweird.f32 %v78
    %vm86 = vmor %vm84, %vm85
    %v87 = vsel %vm86, %v78, %v83
    %v88 = vmul.f32 %v73, %v87
    %v89 = vld [vmem:[#allocation5] sm:$0xff]
    %v90 = vmul.f32 %v89, %v89
    %91 = vadd.xlane.f32.xlu0 %v90
    %v92 = vpop.xlane.xlu0 %91
    %v93 = vmax.f32 %v92, 1e-24
    %v94 = vrsqrt.pop %v93
    %v95 = vmul.f32 %v94, %v93
    %v96 = vmul.f32 %v95, %v94
    %v97 = vmul.f32 0.5, %v96
    %v98 = vsub.f32 1.5, %v97
    %v99 = vmul.f32 %v94, %v98
    %vm100 = vweird.f32 %v93
    %vm101 = vweird.f32 %v94
    %vm102 = vmor %vm100, %vm101
    %v103 = vsel %vm102, %v94, %v99
    %v104 = vmul.f32 %v89, %v103
    %105 = vmatpush.xpose.msra.mxu0 0.0
    %106 = vmatpush.xpose.msra.mxu0 0.0
    %107 = vmatpush.xpose.msra.mxu0 0.0
    %108 = vmatpush.xpose.msra.mxu0 0.0
    %109 = vmatpush.xpose.msra.mxu0 0.0
    %110 = vmatpush.xpose.msra.mxu0 0.0
    %111 = vmatpush.xpose.msra.mxu0 0.0
    %112 = vmatpush.xpose.msra.mxu0 0.0
    %113 = vmatpush.xpose.msra.mxu0 0.0
    %114 = vmatpush.xpose.msra.mxu0 0.0
    %115 = vmatpush.xpose.msra.mxu0 0.0
    %116 = vmatpush.xpose.msra.mxu0 0.0
    %117 = vmatpush.xpose.msra.mxu0 0.0
    %118 = vmatpush.xpose.msra.mxu0 0.0
    %119 = vmatpush.xpose.msra.mxu0 0.0
    %120 = vmatpush.xpose.msra.mxu0 %v104
    %121 = vmatmul.f32.gmra.mxu0 %v88
    %v122 = vpop.f32.mrf.mxu0
    %v123 = vadd.f32 0.0, %v122
    %124 = vdwg.mxu0
    %v125 = vmul.f32 %v123, 33.333332
    %126 = vmatpush.xpose.msra.mxu0 0.0
    %127 = vmatpush.xpose.msra.mxu0 0.0
    %128 = vmatpush.xpose.msra.mxu0 0.0
    %129 = vmatpush.xpose.msra.mxu0 0.0
    %130 = vmatpush.xpose.msra.mxu0 0.0
    %131 = vmatpush.xpose.msra.mxu0 0.0
    %132 = vmatpush.xpose.msra.mxu0 0.0
    %133 = vmatpush.xpose.msra.mxu0 0.0
    %134 = vmatpush.xpose.msra.mxu0 0.0
    %135 = vmatpush.xpose.msra.mxu0 0.0
    %136 = vmatpush.xpose.msra.mxu0 0.0
    %137 = vmatpush.xpose.msra.mxu0 0.0
    %138 = vmatpush.xpose.msra.mxu0 0.0
    %139 = vmatpush.xpose.msra.mxu0 0.0
    %140 = vmatpush.xpose.msra.mxu0 0.0
    %141 = vmatpush.xpose.msra.mxu0 %v88
    %142 = vmatmul.f32.gmra.mxu0 %v88
    %v143 = vpop.f32.mrf.mxu0
    %v144 = vadd.f32 0.0, %v143
    %145 = vdwg.mxu0
    %v146 = vmul.f32 %v144, 33.333332
    %147 = vmatpush.xpose.msra.mxu0 0.0
    %148 = vmatpush.xpose.msra.mxu0 0.0
    %149 = vmatpush.xpose.msra.mxu0 0.0
    %150 = vmatpush.xpose.msra.mxu0 0.0
    %151 = vmatpush.xpose.msra.mxu0 0.0
    %152 = vmatpush.xpose.msra.mxu0 0.0
    %153 = vmatpush.xpose.msra.mxu0 0.0
    %154 = vmatpush.xpose.msra.mxu0 0.0
    %155 = vmatpush.xpose.msra.mxu0 0.0
    %156 = vmatpush.xpose.msra.mxu0 0.0
    %157 = vmatpush.xpose.msra.mxu0 0.0
    %158 = vmatpush.xpose.msra.mxu0 0.0
    %159 = vmatpush.xpose.msra.mxu0 0.0
    %160 = vmatpush.xpose.msra.mxu0 0.0
    %161 = vmatpush.xpose.msra.mxu0 0.0
    %162 = vmatpush.xpose.msra.mxu0 %v104
    %163 = vmatmul.f32.gmra.mxu0 %v104
    %v164 = vpop.f32.mrf.mxu0
    %v165 = vadd.f32 0.0, %v164
    %166 = vdwg.mxu0
    %v167 = vmul.f32 %v165, 33.333332
    %v168 = vlaneseq
    %v169 = vshrl.u32 %v168, 7
    %v170 = vlaneseq
    %v171 = vand.u32 %v170, 127
    %vm172 = vcmp.eq.s32.totalorder %v169, %v171
    %v173 = vld [vmem:[#allocation7] sm:$0xff]
    %v174 = vrot.slane %v173, 4
    %v175 = vadd.f32 %v173, %v174
    %v176 = vrot.slane %v175, 2
    %v177 = vadd.f32 %v175, %v176
    %v178 = vrot.slane %v177, 1
    %v179 = vadd.f32 %v177, %v178
    %v180 = vsub.f32 %v179, %v173
    %v181 = vmul.f32 %v173, %v180
    %182 = vadd.xlane.f32.xlu0 %v181
    %v183 = vpop.xlane.xlu0 %182
    %v184 = vmul.f32 %v183, 0.125
    %v185 = vpack.c.bf16 %v181, %v181
    %v186 = vunpack.c.l.bf16 %v185
    %v187 = vsub.f32 %v181, %v186
    %188 = vmatpush.xpose.msra.mxu0 0.0
    %189 = vmatpush.xpose.msra.mxu0 0.0
    %190 = vmatpush.xpose.msra.mxu0 0.0
    %191 = vmatpush.xpose.msra.mxu0 0.0
    %192 = vmatpush.xpose.msra.mxu0 0.0
    %193 = vmatpush.xpose.msra.mxu0 0.0
    %194 = vmatpush.xpose.msra.mxu0 0.0
    %195 = vmatpush.xpose.msra.mxu0 0.0
    %196 = vmatpush.xpose.msra.mxu0 0.0
    %197 = vmatpush.xpose.msra.mxu0 0.0
    %198 = vmatpush.xpose.msra.mxu0 0.0
    %199 = vmatpush.xpose.msra.mxu0 0.0
    %200 = vmatpush.xpose.msra.mxu0 0.0
    %201 = vmatpush.xpose.msra.mxu0 0.0
    %202 = vmatpush.xpose.msra.mxu0 0.0
    %203 = vmatpush.xpose.msra.mxu0 %v187
    %204 = vmatmul.f32.gmra.mxu0 1.0
    %v205 = vpop.f32.mrf.mxu0
    %v206 = vadd.f32 0.0, %v205
    %207 = vdwg.mxu0
    %208 = vmatpush.xpose.msra.mxu0 0.0
    %209 = vmatpush.xpose.msra.mxu0 0.0
    %210 = vmatpush.xpose.msra.mxu0 0.0
    %211 = vmatpush.xpose.msra.mxu0 0.0
    %212 = vmatpush.xpose.msra.mxu0 0.0
    %213 = vmatpush.xpose.msra.mxu0 0.0
    %214 = vmatpush.xpose.msra.mxu0 0.0
    %215 = vmatpush.xpose.msra.mxu0 0.0
    %216 = vmatpush.xpose.msra.mxu0 0.0
    %217 = vmatpush.xpose.msra.mxu0 0.0
    %218 = vmatpush.xpose.msra.mxu0 0.0
    %219 = vmatpush.xpose.msra.mxu0 0.0
    %220 = vmatpush.xpose.msra.mxu0 0.0
    %221 = vmatpush.xpose.msra.mxu0 0.0
    %222 = vmatpush.xpose.msra.mxu0 0.0
    %223 = vmatpush.xpose.msra.mxu0 %v186
    %224 = vmatmul.f32.gmra.mxu0 1.0
    %v225 = vpop.f32.mrf.mxu0
    %v226 = vadd.f32 %v206, %v225
    %227 = vdwg.mxu0
    %v228 = vmul.f32 %v226, 0.125
    %v229 = vld [vmem:[#allocation8] sm:$0xff]
    %v230 = vrot.slane %v229, 4
    %v231 = vadd.f32 %v229, %v230
    %v232 = vrot.slane %v231, 2
    %v233 = vadd.f32 %v231, %v232
    %v234 = vrot.slane %v233, 1
    %v235 = vadd.f32 %v233, %v234
    %v236 = vsub.f32 %v235, %v229
    %v237 = vmul.f32 %v229, %v236
    %238 = vadd.xlane.f32.xlu0 %v237
    %v239 = vpop.xlane.xlu0 %238
    %v240 = vmul.f32 %v239, 0.125
    %v241 = vpack.c.bf16 %v237, %v237
    %v242 = vunpack.c.l.bf16 %v241
    %v243 = vsub.f32 %v237, %v242
    %244 = vmatpush.xpose.msra.mxu0 0.0
    %245 = vmatpush.xpose.msra.mxu0 0.0
    %246 = vmatpush.xpose.msra.mxu0 0.0
    %247 = vmatpush.xpose.msra.mxu0 0.0
    %248 = vmatpush.xpose.msra.mxu0 0.0
    %249 = vmatpush.xpose.msra.mxu0 0.0
    %250 = vmatpush.xpose.msra.mxu0 0.0
    %251 = vmatpush.xpose.msra.mxu0 0.0
    %252 = vmatpush.xpose.msra.mxu0 0.0
    %253 = vmatpush.xpose.msra.mxu0 0.0
    %254 = vmatpush.xpose.msra.mxu0 0.0
    %255 = vmatpush.xpose.msra.mxu0 0.0
    %256 = vmatpush.xpose.msra.mxu0 0.0
    %257 = vmatpush.xpose.msra.mxu0 0.0
    %258 = vmatpush.xpose.msra.mxu0 0.0
    %259 = vmatpush.xpose.msra.mxu0 %v243
    %260 = vmatmul.f32.gmra.mxu0 1.0
    %v261 = vpop.f32.mrf.mxu0
    %v262 = vadd.f32 0.0, %v261
    %263 = vdwg.mxu0
    %264 = vmatpush.xpose.msra.mxu0 0.0
    %265 = vmatpush.xpose.msra.mxu0 0.0
    %266 = vmatpush.xpose.msra.mxu0 0.0
    %267 = vmatpush.xpose.msra.mxu0 0.0
    %268 = vmatpush.xpose.msra.mxu0 0.0
    %269 = vmatpush.xpose.msra.mxu0 0.0
    %270 = vmatpush.xpose.msra.mxu0 0.0
    %271 = vmatpush.xpose.msra.mxu0 0.0
    %272 = vmatpush.xpose.msra.mxu0 0.0
    %273 = vmatpush.xpose.msra.mxu0 0.0
    %274 = vmatpush.xpose.msra.mxu0 0.0
    %275 = vmatpush.xpose.msra.mxu0 0.0
    %276 = vmatpush.xpose.msra.mxu0 0.0
    %277 = vmatpush.xpose.msra.mxu0 0.0
    %278 = vmatpush.xpose.msra.mxu0 0.0
    %279 = vmatpush.xpose.msra.mxu0 %v242
    %280 = vmatmul.f32.gmra.mxu0 1.0
    %v281 = vpop.f32.mrf.mxu0
    %v282 = vadd.f32 %v262, %v281
    %283 = vdwg.mxu0
    %v284 = vmul.f32 %v282, 0.125
    %v285 = vmul.f32 %v88, %v104
    %286 = vadd.xlane.f32.xlu0 %v285
    %v287 = vpop.xlane.xlu0 %286
    %v288 = vmul.f32 %v287, 33.333332
    %v289 = vpack.c.bf16 %v285, %v285
    %v290 = vunpack.c.l.bf16 %v289
    %v291 = vsub.f32 %v285, %v290
    %292 = vmatpush.xpose.msra.mxu0 0.0
    %293 = vmatpush.xpose.msra.mxu0 0.0
    %294 = vmatpush.xpose.msra.mxu0 0.0
    %295 = vmatpush.xpose.msra.mxu0 0.0
    %296 = vmatpush.xpose.msra.mxu0 0.0
    %297 = vmatpush.xpose.msra.mxu0 0.0
    %298 = vmatpush.xpose.msra.mxu0 0.0
    %299 = vmatpush.xpose.msra.mxu0 0.0
    %300 = vmatpush.xpose.msra.mxu0 0.0
    %301 = vmatpush.xpose.msra.mxu0 0.0
    %302 = vmatpush.xpose.msra.mxu0 0.0
    %303 = vmatpush.xpose.msra.mxu0 0.0
    %304 = vmatpush.xpose.msra.mxu0 0.0
    %305 = vmatpush.xpose.msra.mxu0 0.0
    %306 = vmatpush.xpose.msra.mxu0 0.0
    %307 = vmatpush.xpose.msra.mxu0 %v291
    %308 = vmatmul.f32.gmra.mxu0 1.0
    %v309 = vpop.f32.mrf.mxu0
    %v310 = vadd.f32 0.0, %v309
    %311 = vdwg.mxu0
    %312 = vmatpush.xpose.msra.mxu0 0.0
    %313 = vmatpush.xpose.msra.mxu0 0.0
    %314 = vmatpush.xpose.msra.mxu0 0.0
    %315 = vmatpush.xpose.msra.mxu0 0.0
    %316 = vmatpush.xpose.msra.mxu0 0.0
    %317 = vmatpush.xpose.msra.mxu0 0.0
    %318 = vmatpush.xpose.msra.mxu0 0.0
    %319 = vmatpush.xpose.msra.mxu0 0.0
    %320 = vmatpush.xpose.msra.mxu0 0.0
    %321 = vmatpush.xpose.msra.mxu0 0.0
    %322 = vmatpush.xpose.msra.mxu0 0.0
    %323 = vmatpush.xpose.msra.mxu0 0.0
    %324 = vmatpush.xpose.msra.mxu0 0.0
    %325 = vmatpush.xpose.msra.mxu0 0.0
    %326 = vmatpush.xpose.msra.mxu0 0.0
    %327 = vmatpush.xpose.msra.mxu0 %v290
    %328 = vmatmul.f32.gmra.mxu0 1.0
    %v329 = vpop.f32.mrf.mxu0
    %v330 = vadd.f32 %v310, %v329
    %331 = vdwg.mxu0
    %v332 = vmul.f32 %v330, 33.333332
    %vm333 = vcmask 57344
    %v334 = vsel %vm333, %v228, -inf
    %335 = vmax.xlane.f32.xlu0 %v334
    %v336 = vpop.xlane.xlu0 %335
    %v337 = vrcp.pop %v336
    %v338 = vmul.f32 %v336, %v337
    %v339 = vsub.f32 1.0, %v338
    %v340 = vmul.f32 %v337, %v339
    %v341 = vadd.f32 %v337, %v340
    %vm342 = vweird.f32 %v336
    %vm343 = vweird.f32 %v337
    %vm344 = vmor %vm342, %vm343
    %v345 = vsel %vm344, %v337, %v341
    %v346 = vand.u32 2147483647, %v336
    %vm347 = vcmp.eq.f32.partialorder %v346, 8.507059e+37
    %v348 = vand.u32 %v336, 2147483648
    %v349 = vor.u32 1.1754944e-38, %v348
    %v350 = vsel %vm347, %v349, %v345
    %v351 = vmul.f32 %v228, %v350
    %vm352 = vcmp.le.f32.partialorder %v351, 0.7
    %vm353 = vcmp.lt.f32.partialorder %v351, 0.7
    %v354 = vsel %vm352, 1, 0
    %v355 = vperm.slane %v354, 0
    %vm356 = vcmp.eq.s32.totalorder %v355, 1
    %vm357 = vmor %vm172, %vm356
    %v358 = vsel %vm357, %v125, 0.0
    %v359 = vmul.f32 %v146, 0.8
    %v360 = vsel %vm172, 0.0, %v359
    %v361 = vsel %vm353, 1, 0
    %v362 = vperm.slane %v361, 0
    %vm363 = vcmp.eq.s32.totalorder %v362, 1
    %v364 = vsel %vm363, %v360, 0.0
    %v365 = vmax.f32 %v358, %v364
    %vm366 = vcmask 64512
    %v367 = vsel %vm366, %v365, -inf
    %368 = vmax.xlane.f32.xlu0 %v367
    %v369 = vpop.xlane.xlu0 %368
    %v370 = vsub.f32 %v358, %v369
    %v371 = vmul.f32 %v370, 1.442695
    %v372 = vpow.pop %v371
    %v373 = vsub.f32 %v360, %v369
    %v374 = vmul.f32 %v373, 1.442695
    %v375 = vpow.pop %v374
    %v376 = vsel %vm363, %v375, 0.0
    %v377 = vadd.f32 %v372, %v376
    %v378 = vsel %vm366, %v377, 0.0
    %379 = vadd.xlane.f32.xlu0 %v378
    %v380 = vpop.xlane.xlu0 %379
    %v381 = vlog2.pop %v380
    %v382 = vmul.f32 %v381, 0.6931472
    %v383 = vadd.f32 %v369, %v382
    %v384 = vsub.f32 %v383, %v288
    %v385 = vrot.slane %v184, 4
    %v386 = vadd.f32 %v184, %v385
    %v387 = vrot.slane %v386, 2
    %v388 = vadd.f32 %v386, %v387
    %v389 = vrot.slane %v388, 1
    %v390 = vadd.f32 %v388, %v389
    %v391 = vrcp.pop %v390
    %v392 = vmul.f32 %v390, %v391
    %v393 = vsub.f32 1.0, %v392
    %v394 = vmul.f32 %v391, %v393
    %v395 = vadd.f32 %v391, %v394
    %vm396 = vweird.f32 %v390
    %vm397 = vweird.f32 %v391
    %vm398 = vmor %vm396, %vm397
    %v399 = vsel %vm398, %v391, %v395
    %v400 = vand.u32 2147483647, %v390
    %vm401 = vcmp.eq.f32.partialorder %v400, 8.507059e+37
    %v402 = vand.u32 %v390, 2147483648
    %v403 = vor.u32 1.1754944e-38, %v402
    %v404 = vsel %vm401, %v403, %v399
    %v405 = vmul.f32 %v184, %v404
    %v406 = vrot.slane %v405, 4
    %v407 = vmax.f32 %v405, %v406
    %v408 = vrot.slane %v407, 2
    %v409 = vmax.f32 %v407, %v408
    %v410 = vrot.slane %v409, 1
    %v411 = vmax.f32 %v409, %v410
    %v412 = vsub.f32 %v405, %v411
    %v413 = vrcp.pop 0.0035
    %v414 = vmul.f32 0.0035, %v413
    %v415 = vsub.f32 1.0, %v414
    %v416 = vmul.f32 %v413, %v415
    %v417 = vadd.f32 %v413, %v416
    %vm418 = vweird.f32 %v413
    %v419 = vsel %vm418, %v413, %v417
    %v420 = vmul.f32 %v412, %v419
    %v421 = vmul.f32 %v420, 1.442695
    %v422 = vpow.pop %v421
    %v423 = vmul.f32 %v384, %v422
    %v424 = vrot.slane %v423, 4
    %v425 = vadd.f32 %v423, %v424
    %v426 = vrot.slane %v425, 2
    %v427 = vadd.f32 %v425, %v426
    %v428 = vrot.slane %v427, 1
    %v429 = vadd.f32 %v427, %v428
    %v430 = vrot.slane %v422, 4
    %v431 = vadd.f32 %v422, %v430
    %v432 = vrot.slane %v431, 2
    %v433 = vadd.f32 %v431, %v432
    %v434 = vrot.slane %v433, 1
    %v435 = vadd.f32 %v433, %v434
    %v436 = vrcp.pop %v435
    %v437 = vmul.f32 %v435, %v436
    %v438 = vsub.f32 1.0, %v437
    %v439 = vmul.f32 %v436, %v438
    %v440 = vadd.f32 %v436, %v439
    %vm441 = vweird.f32 %v435
    %vm442 = vweird.f32 %v436
    %vm443 = vmor %vm441, %vm442
    %v444 = vsel %vm443, %v436, %v440
    %v445 = vand.u32 2147483647, %v435
    %vm446 = vcmp.eq.f32.partialorder %v445, 8.507059e+37
    %v447 = vand.u32 %v435, 2147483648
    %v448 = vor.u32 1.1754944e-38, %v447
    %v449 = vsel %vm446, %v448, %v444
    %v450 = vmul.f32 %v429, %v449
    %v451 = vrot.slane %v240, 4
    %v452 = vmax.f32 %v240, %v451
    %v453 = vrot.slane %v452, 2
    %v454 = vmax.f32 %v452, %v453
    %v455 = vrot.slane %v454, 1
    %v456 = vmax.f32 %v454, %v455
    %v457 = vrcp.pop %v456
    %v458 = vmul.f32 %v456, %v457
    %v459 = vsub.f32 1.0, %v458
    %v460 = vmul.f32 %v457, %v459
    %v461 = vadd.f32 %v457, %v460
    %vm462 = vweird.f32 %v456
    %vm463 = vweird.f32 %v457
    %vm464 = vmor %vm462, %vm463
    %v465 = vsel %vm464, %v457, %v461
    %v466 = vand.u32 2147483647, %v456
    %vm467 = vcmp.eq.f32.partialorder %v466, 8.507059e+37
    %v468 = vand.u32 %v456, 2147483648
    %v469 = vor.u32 1.1754944e-38, %v468
    %v470 = vsel %vm467, %v469, %v465
    %v471 = vmul.f32 %v240, %v470
    %vm472 = vcmp.le.f32.partialorder %v471, 0.7
    %vm473 = vcmp.lt.f32.partialorder %v471, 0.7
    %v474 = vsel %vm472, 1, 0
    %vm475 = vcmp.eq.s32.totalorder %v474, 1
    %vm476 = vmor %vm172, %vm475
    %v477 = vsel %vm476, %v125, 0.0
    %v478 = vmul.f32 %v167, 0.8
    %v479 = vsel %vm172, 0.0, %v478
    %v480 = vsel %vm473, 1, 0
    %vm481 = vcmp.eq.s32.totalorder %v480, 1
    %v482 = vsel %vm481, %v479, 0.0
    %v483 = vmax.f32 %v477, %v482
    %v484 = vsel %vm366, %v483, -inf
    %v485 = vrot.slane %v484, 4
    %v486 = vmax.f32 %v484, %v485
    %v487 = vrot.slane %v486, 2
    %v488 = vmax.f32 %v486, %v487
    %v489 = vrot.slane %v488, 1
    %v490 = vmax.f32 %v488, %v489
    %v491 = vsub.f32 %v477, %v490
    %v492 = vmul.f32 %v491, 1.442695
    %v493 = vpow.pop %v492
    %v494 = vsub.f32 %v479, %v490
    %v495 = vmul.f32 %v494, 1.442695
    %v496 = vpow.pop %v495
    %v497 = vsel %vm481, %v496, 0.0
    %v498 = vadd.f32 %v493, %v497
    %v499 = vsel %vm366, %v498, 0.0
    %v500 = vrot.slane %v499, 4
    %v501 = vadd.f32 %v499, %v500
    %v502 = vrot.slane %v501, 2
    %v503 = vadd.f32 %v501, %v502
    %v504 = vrot.slane %v503, 1
    %v505 = vadd.f32 %v503, %v504
    %v506 = vlog2.pop %v505
    %v507 = vmul.f32 %v506, 0.6931472
    %v508 = vadd.f32 %v490, %v507
    %v509 = vsub.f32 %v508, %v332
    %v510 = vsel %vm333, %v284, 0.0
    %511 = vadd.xlane.f32.xlu0 %v510
    %v512 = vpop.xlane.xlu0 %511
    %v513 = vrcp.pop %v512
    %v514 = vmul.f32 %v512, %v513
    %v515 = vsub.f32 1.0, %v514
    %v516 = vmul.f32 %v513, %v515
    %v517 = vadd.f32 %v513, %v516
    %vm518 = vweird.f32 %v512
    %vm519 = vweird.f32 %v513
    %vm520 = vmor %vm518, %vm519
    %v521 = vsel %vm520, %v513, %v517
    %v522 = vand.u32 2147483647, %v512
    %vm523 = vcmp.eq.f32.partialorder %v522, 8.507059e+37
    %v524 = vand.u32 %v512, 2147483648
    %v525 = vor.u32 1.1754944e-38, %v524
    %v526 = vsel %vm523, %v525, %v521
    %v527 = vmul.f32 %v284, %v526
    %v528 = vsel %vm333, %v527, -inf
    %529 = vmax.xlane.f32.xlu0 %v528
    %v530 = vpop.xlane.xlu0 %529
    %v531 = vsub.f32 %v527, %v530
    %v532 = vmul.f32 %v531, %v419
    %v533 = vmul.f32 %v532, 1.442695
    %v534 = vpow.pop %v533
    %v535 = vmul.f32 %v509, %v534
    %v536 = vsel %vm333, %v535, 0.0
    %537 = vadd.xlane.f32.xlu0 %v536
    %v538 = vpop.xlane.xlu0 %537
    %v539 = vsel %vm333, %v534, 0.0
    %540 = vadd.xlane.f32.xlu0 %v539
    %v541 = vpop.xlane.xlu0 %540
    %v542 = vrcp.pop %v541
    %v543 = vmul.f32 %v541, %v542
    %v544 = vsub.f32 1.0, %v543
    %v545 = vmul.f32 %v542, %v544
    %v546 = vadd.f32 %v542, %v545
    %vm547 = vweird.f32 %v541
    %vm548 = vweird.f32 %v542
    %vm549 = vmor %vm547, %vm548
    %v550 = vsel %vm549, %v542, %v546
    %v551 = vand.u32 2147483647, %v541
    %vm552 = vcmp.eq.f32.partialorder %v551, 8.507059e+37
    %v553 = vand.u32 %v541, 2147483648
    %v554 = vor.u32 1.1754944e-38, %v553
    %v555 = vsel %vm552, %v554, %v550
    %v556 = vmul.f32 %v538, %v555
    %v557 = vadd.f32 %v450, %v556
    %v558 = vmul.f32 %v557, 0.5
    %vm559 = vcmask 0
    %560 = vst.msk [vmem:[#allocation10] sm:$0x1] %vm559, %v558
    // Predicated region
    $region34: #{tpu_custom_call.1} parent=1 // pred_check
      _
    $region35: #{tpu_custom_call.1} parent=1 // pred_check_branch
      %562 = sbr.rel (0) target = $region37
    $region36: #{tpu_custom_call.1} parent=1 // pred_region
      %564 = vsyncadd [#allocation4], 0
      %s566 = sshll.u32 [#allocation10], 4
      %s567 = int_to_ptr.vmem [resolvable:$true] %s566
      %s568 = sshll.u32 %s4, 4
      %s569 = int_to_ptr.hbm [resolvable:$true] %s568
      %571 = dma.vmem_to_hbm [thread:$0]  %s567, 16, %s569, [#allocation4]
    $region37: #{tpu_custom_call.1} parent=1 // pred_fallthru
      _
    // Predicated region
    $region38: #{tpu_custom_call.1} parent=1 // pred_check
      _
    $region39: #{tpu_custom_call.1} parent=1 // pred_check_branch
      %573 = sbr.rel (0) target = $region41
    $region40: #{tpu_custom_call.1} parent=1 // pred_region
      %575 = dma.done [#allocation4], 16
    $region41: #{tpu_custom_call.1} parent=1 // pred_fallthru
      _
    %576 = vsyncpa [#allocation3], 1
    %577 = vsyncpa [#allocation6], 1
    %578 = vsyncpa [#allocation9], 1
    %579 = vsyncpa [#allocation4], 1

</llo_original>
